<compile_context>
chip_gen: v6e
topology: v6e:2x2x1
jax: 0.10.0
libtpu: 0.0.40
codegen_flags: <defaults>
</compile_context>

<pallas_src>
import jax
import jax.numpy as jnp
from jax.experimental import pallas as pl
from jax.experimental.pallas import tpu as pltpu

LN_EPS = 1e-6                      # module default: partial(nn.LayerNorm, eps=1e-06)
_MATMUL_DTYPE = jnp.bfloat16       # MXU operand dtype (f32 accumulation)
_ACT_DTYPE = jnp.bfloat16          # inter-kernel activation dtype
_VMEM_LIMIT = 32 * 1024 * 1024     # safe on v5e/v6e/v7x for the tile sizes below
_ROW_TILE_BUDGET = 8 << 20         # cap on double-buffered x-tile bytes (v7x headroom)


def _layernorm(x, g, b):
    """PyTorch-style LayerNorm over the last dim (biased variance, eps inside sqrt)."""
    mu = jnp.mean(x, axis=-1, keepdims=True)
    xc = x - mu
    var = jnp.mean(xc * xc, axis=-1, keepdims=True)
    return xc * jax.lax.rsqrt(var + LN_EPS) * g + b


def _round_up(n, m):
    return ((n + m - 1) // m) * m


def _pick_tile(n, candidates):
    """Largest candidate tile that evenly divides n, else the full extent."""
    for c in candidates:
        if c <= n and n % c == 0:
            return c
    return n


def _row_plan(M, K, in_bytes):
    """Row tile capped so the double-buffered (tm, K) x tile stays under budget,
    plus the padded row count (rows are padded, never a silent full-extent tile)."""
    t = 512
    while t > 8 and t * K * in_bytes * 2 > _ROW_TILE_BUDGET:
        t //= 2
    if M <= t:
        t = _round_up(max(M, 1), 8)
    return t, _round_up(M, t)


def _pad_rows(a, Mp):
    M = a.shape[0]
    if Mp == M:
        return a
    return jnp.pad(a, ((0, Mp - M), (0, 0)))


# ----------------------------------------------------------------------------- #
# Kernel 1: fused row-wise linear  y = [LN](x) @ W + b  [-> GELU] [+ residual]
#   grid = (row_tiles, col_tiles); the LN'd + bf16-cast x row tile is hoisted into
#   VMEM scratch at j == 0 (j axis "arbitrary") so it is not recomputed per column.
# ----------------------------------------------------------------------------- #
def linear_op(x2d, w, b, *, ln=None, gelu=False, residual=None, out_dtype=_ACT_DTYPE):
    M, K = x2d.shape
    Kw, N = w.shape
    assert Kw == K
    tm, Mp = _row_plan(M, K, x2d.dtype.itemsize)
    tn = _pick_tile(N, (512, 256, 128))
    has_ln = ln is not None
    has_res = residual is not None

    xp = _pad_rows(x2d, Mp)
    rp = _pad_rows(residual, Mp) if has_res else None

    def kernel(*refs):
        idx = 0
        x_ref = refs[idx]; idx += 1
        if has_ln:
            g_ref, bln_ref = refs[idx], refs[idx + 1]; idx += 2
        w_ref, bias_ref = refs[idx], refs[idx + 1]; idx += 2
        if has_res:
            res_ref = refs[idx]; idx += 1
        o_ref = refs[idx]; idx += 1
        if has_ln:
            xln_ref = refs[idx]; idx += 1

        if has_ln:
            # LN + cast computed once per row tile, reused across all column tiles.
            @pl.when(pl.program_id(1) == 0)
            def _():
                h = x_ref[...].astype(jnp.float32)
                xln_ref[...] = _layernorm(
                    h, g_ref[...], bln_ref[...]).astype(_MATMUL_DTYPE)
            h_lp = xln_ref[...]
        else:
            h_lp = x_ref[...].astype(_MATMUL_DTYPE)

        y = jnp.dot(h_lp, w_ref[...],
                    preferred_element_type=jnp.float32) + bias_ref[...]
        if gelu:
            # TODO(synk): PyTorch nn.GELU default is the exact erf form; tanh
            # approximation used because Mosaic erf lowering is version-dependent.
            y = jax.nn.gelu(y, approximate=True)
        if has_res:
            y = y + res_ref[...].astype(jnp.float32)
        o_ref[...] = y.astype(o_ref.dtype)

    in_specs = [pl.BlockSpec((tm, K), lambda i, j: (i, 0))]
    operands = [xp]
    if has_ln:
        g, bb = ln
        in_specs += [pl.BlockSpec((1, K), lambda i, j: (0, 0)),
                     pl.BlockSpec((1, K), lambda i, j: (0, 0))]
        operands += [g, bb]
    in_specs += [pl.BlockSpec((K, tn), lambda i, j: (0, j)),
                 pl.BlockSpec((1, tn), lambda i, j: (0, j))]
    operands += [w, b]
    if has_res:
        in_specs.append(pl.BlockSpec((tm, tn), lambda i, j: (i, j)))
        operands.append(rp)

    scratch = [pltpu.VMEM((tm, K), _MATMUL_DTYPE)] if has_ln else []

    out = pl.pallas_call(
        kernel,
        grid=(Mp // tm, N // tn),
        in_specs=in_specs,
        out_specs=pl.BlockSpec((tm, tn), lambda i, j: (i, j)),
        out_shape=jax.ShapeDtypeStruct((Mp, N), out_dtype),
        scratch_shapes=scratch,
        compiler_params=pltpu.CompilerParams(
            dimension_semantics=("parallel", "arbitrary"),
            vmem_limit_bytes=_VMEM_LIMIT,
        ),
    )(*operands)
    return out[:M] if Mp != M else out


# ----------------------------------------------------------------------------- #
# Kernel 2: fused norm1 + QKV projection with THREE separate outputs (q, k, v),
#   so downstream attention never DMAs dead bytes.  LN hoisted as in linear_op.
# ----------------------------------------------------------------------------- #
def qkv_op(x2d, wq, bq, wk, bk, wv, bv, ln, out_dtype=_ACT_DTYPE):
    M, K = x2d.shape
    D = wq.shape[1]
    tm, Mp = _row_plan(M, K, x2d.dtype.itemsize)
    tn = _pick_tile(D, (512, 256, 128))
    xp = _pad_rows(x2d, Mp)
    g, bb = ln

    def kernel(x_ref, g_ref, bln_ref, wq_ref, bq_ref, wk_ref, bk_ref, wv_ref, bv_ref,
               q_ref, k_ref, v_ref, xln_ref):
        @pl.when(pl.program_id(1) == 0)
        def _():
            h = x_ref[...].astype(jnp.float32)
            xln_ref[...] = _layernorm(h, g_ref[...], bln_ref[...]).astype(_MATMUL_DTYPE)
        h_lp = xln_ref[...]
        q_ref[...] = (jnp.dot(h_lp, wq_ref[...], preferred_element_type=jnp.float32)
                      + bq_ref[...]).astype(q_ref.dtype)
        k_ref[...] = (jnp.dot(h_lp, wk_ref[...], preferred_element_type=jnp.float32)
                      + bk_ref[...]).astype(k_ref.dtype)
        v_ref[...] = (jnp.dot(h_lp, wv_ref[...], preferred_element_type=jnp.float32)
                      + bv_ref[...]).astype(v_ref.dtype)

    w_spec = lambda: pl.BlockSpec((K, tn), lambda i, j: (0, j))
    b_spec = lambda: pl.BlockSpec((1, tn), lambda i, j: (0, j))
    o_spec = lambda: pl.BlockSpec((tm, tn), lambda i, j: (i, j))
    q, k, v = pl.pallas_call(
        kernel,
        grid=(Mp // tm, D // tn),
        in_specs=[pl.BlockSpec((tm, K), lambda i, j: (i, 0)),
                  pl.BlockSpec((1, K), lambda i, j: (0, 0)),
                  pl.BlockSpec((1, K), lambda i, j: (0, 0)),
                  w_spec(), b_spec(), w_spec(), b_spec(), w_spec(), b_spec()],
        out_specs=(o_spec(), o_spec(), o_spec()),
        out_shape=(jax.ShapeDtypeStruct((Mp, D), out_dtype),
                   jax.ShapeDtypeStruct((Mp, D), out_dtype),
                   jax.ShapeDtypeStruct((Mp, D), out_dtype)),
        scratch_shapes=[pltpu.VMEM((tm, K), _MATMUL_DTYPE)],
        compiler_params=pltpu.CompilerParams(
            dimension_semantics=("parallel", "arbitrary"),
            vmem_limit_bytes=_VMEM_LIMIT,
        ),
    )(xp, g, bb, wq, bq, wk, bk, wv, bv)
    if Mp != M:
        q, k, v = q[:M], k[:M], v[:M]
    return q, k, v


# ----------------------------------------------------------------------------- #
# Kernel 3: fused MLP  y = x + fc2(GELU(fc1(LN(x))))
#   grid = (row_tiles, hidden_tiles); hidden axis "arbitrary" with an f32 (tm, D)
#   accumulator in VMEM scratch -> the (B*T, 4D) hidden tensor never hits HBM.
# ----------------------------------------------------------------------------- #
def mlp_op(x2d, ln_g, ln_b, w1, b1, w2, b2, residual, out_dtype=_ACT_DTYPE):
    M, D = x2d.shape
    H = w1.shape[1]
    tm, Mp = _row_plan(M, D, 8)        # 8 bytes/elem budget: x + bf16 LN scratch + f32 acc
    th = _pick_tile(H, (512, 256, 128))
    xp = _pad_rows(x2d, Mp)
    rp = _pad_rows(residual, Mp)

    def kernel(x_ref, g_ref, bln_ref, w1_ref, b1_ref, w2_ref, b2_ref, res_ref,
               o_ref, xln_ref, acc_ref):
        h_idx = pl.program_id(1)

        @pl.when(h_idx == 0)
        def _():
            xin = x_ref[...].astype(jnp.float32)
            xln_ref[...] = _layernorm(xin, g_ref[...], bln_ref[...]).astype(_MATMUL_DTYPE)
            acc_ref[...] = jnp.zeros_like(acc_ref)

        hblk = jnp.dot(xln_ref[...], w1_ref[...],
                       preferred_element_type=jnp.float32) + b1_ref[...]
        # TODO(synk): exact-erf GELU (PyTorch default) vs tanh approximation.
        hblk = jax.nn.gelu(hblk, approximate=True)
        acc_ref[...] += jnp.dot(hblk.astype(_MATMUL_DTYPE), w2_ref[...],
                                preferred_element_type=jnp.float32)

        @pl.when(h_idx == pl.num_programs(1) - 1)
        def _():
            o_ref[...] = (acc_ref[...] + b2_ref[...]
                          + res_ref[...].astype(jnp.float32)).astype(o_ref.dtype)

    out = pl.pallas_call(
        kernel,
        grid=(Mp // tm, H // th),
        in_specs=[pl.BlockSpec((tm, D), lambda i, h: (i, 0)),
                  pl.BlockSpec((1, D), lambda i, h: (0, 0)),
                  pl.BlockSpec((1, D), lambda i, h: (0, 0)),
                  pl.BlockSpec((D, th), lambda i, h: (0, h)),
                  pl.BlockSpec((1, th), lambda i, h: (0, h)),
                  pl.BlockSpec((th, D), lambda i, h: (h, 0)),
                  pl.BlockSpec((1, D), lambda i, h: (0, 0)),
                  pl.BlockSpec((tm, D), lambda i, h: (i, 0))],
        out_specs=pl.BlockSpec((tm, D), lambda i, h: (i, 0)),
        out_shape=jax.ShapeDtypeStruct((Mp, D), out_dtype),
        scratch_shapes=[pltpu.VMEM((tm, D), _MATMUL_DTYPE),
                        pltpu.VMEM((tm, D), jnp.float32)],
        compiler_params=pltpu.CompilerParams(
            dimension_semantics=("parallel", "arbitrary"),
            vmem_limit_bytes=_VMEM_LIMIT,
        ),
    )(xp, ln_g, ln_b, w1, b1, w2, b2, rp)
    return out[:M] if Mp != M else out


# ----------------------------------------------------------------------------- #
# Kernel 4: multi-head self-attention over separate q/k/v tensors (B, T, D).
#   grid = (batch, query_tiles).  K/V are only re-DMAed when the batch index
#   changes, and their cast + head transpose is hoisted into VMEM scratch
#   computed only at qi == 0 (qi axis "arbitrary").
# ----------------------------------------------------------------------------- #
def attention(q, k, v, num_heads, out_dtype=_ACT_DTYPE):
    B, T, D = q.shape
    H = num_heads
    Dh = D // H
    scale = Dh ** -0.5
    tq = _pick_tile(T, (256, 128))     # falls back to full T for small sequences

    def kernel(q_ref, k_ref, v_ref, o_ref, kh_s, vh_s):
        @pl.when(pl.program_id(1) == 0)
        def _():
            kh_s[...] = k_ref[0].reshape(T, H, Dh).transpose(1, 0, 2).astype(_MATMUL_DTYPE)
            vh_s[...] = v_ref[0].reshape(T, H, Dh).transpose(1, 0, 2).astype(_MATMUL_DTYPE)

        # Fold the 1/sqrt(Dh) scale into q (O(tq*D) work instead of O(tq*T)).
        qb = q_ref[0].astype(jnp.float32) * scale
        qh = qb.reshape(tq, H, Dh).transpose(1, 0, 2).astype(_MATMUL_DTYPE)
        s = jnp.einsum('hqd,hkd->hqk', qh, kh_s[...],
                       preferred_element_type=jnp.float32)          # (H, tq, T)
        m = jnp.max(s, axis=-1, keepdims=True)
        e = jnp.exp(s - m)
        p = e * pl.reciprocal(jnp.sum(e, axis=-1, keepdims=True), approx=True)
        o = jnp.einsum('hqk,hkd->hqd', p.astype(_MATMUL_DTYPE), vh_s[...],
                       preferred_element_type=jnp.float32)           # (H, tq, Dh)
        o_ref[0] = o.transpose(1, 0, 2).reshape(tq, D).astype(o_ref.dtype)
        # TODO(synk): for very long sequences (T >> 1k) switch to a flash-style
        # online-softmax KV-tile loop so the (H, tq, T) score block stays bounded.

    return pl.pallas_call(
        kernel,
        grid=(B, T // tq),
        in_specs=[
            pl.BlockSpec((1, tq, D), lambda b, qi: (b, qi, 0)),   # query rows
            pl.BlockSpec((1, T, D), lambda b, qi: (b, 0, 0)),     # full K rows
            pl.BlockSpec((1, T, D), lambda b, qi: (b, 0, 0)),     # full V rows
        ],
        out_specs=pl.BlockSpec((1, tq, D), lambda b, qi: (b, qi, 0)),
        out_shape=jax.ShapeDtypeStruct((B, T, D), out_dtype),
        scratch_shapes=[pltpu.VMEM((H, T, Dh), _MATMUL_DTYPE),
                        pltpu.VMEM((H, T, Dh), _MATMUL_DTYPE)],
        compiler_params=pltpu.CompilerParams(
            # Batch axis is megacore-parallel; qi must stay "arbitrary" because the
            # hoisted K/V scratch is carried across query tiles within a batch.
            dimension_semantics=("parallel", "arbitrary"),
            vmem_limit_bytes=_VMEM_LIMIT,
        ),
    )(q, k, v)


# ----------------------------------------------------------------------------- #
# One transformer Block (pre-LN attention + MLP), composed from the kernels above.
# ----------------------------------------------------------------------------- #
def block_forward(x, p, num_heads):
    B, T, D = x.shape
    x2 = x.reshape(B * T, D)
    # norm1 + QKV projection (fused, tiled, three separate outputs)
    q, k, v = qkv_op(x2, p['wq'], p['bq'], p['wk'], p['bk'], p['wv'], p['bv'],
                     ln=(p['ln1_w'], p['ln1_b']))
    # multi-head self-attention (batched heads, query-tiled, hoisted K/V prep)
    attn = attention(q.reshape(B, T, D), k.reshape(B, T, D), v.reshape(B, T, D), num_heads)
    # attention output projection + residual 1
    x1 = linear_op(attn.reshape(B * T, D), p['proj_w'], p['proj_b'], residual=x2)
    # fused norm2 + fc1 + GELU + fc2 + residual 2 (hidden tensor never hits HBM)
    x_out = mlp_op(x1, p['ln2_w'], p['ln2_b'], p['fc1_w'], p['fc1_b'],
                   p['fc2_w'], p['fc2_b'], residual=x1)
    return x_out.reshape(B, T, D)


# ----------------------------------------------------------------------------- #
# Parameters (deterministic, per the module's __init__ shapes).
# Matmul weights are created in bf16 ONCE here (no per-forward re-cast).
# ----------------------------------------------------------------------------- #
def trunc_normal(key, shape, std=0.02):
    return std * jax.random.truncated_normal(key, -2.0, 2.0, shape, jnp.float32)


def init_params(key, input_dim, outputdim, embed_dim, num_patches, depth, mlp_ratio):
    D = embed_dim
    Hd = int(D * mlp_ratio)
    n_out_pad = _round_up(outputdim, 128)     # lane-dense final store; sliced back later
    keys = jax.random.split(key, 4 + depth)
    p = {'outputdim': outputdim}
    # Linear weights stored as (in, out); PyTorch's (out, in) @ transpose is equivalent.
    p['input_proj_w'] = trunc_normal(keys[0], (input_dim, D)).astype(_MATMUL_DTYPE)
    p['input_proj_b'] = jnp.zeros((1, D), jnp.float32)
    p['mask_token'] = 0.02 * jax.random.normal(keys[1], (1, 1, D), jnp.float32)
    p['pos_embed'] = jnp.zeros((1, num_patches + 1, D), jnp.float32)  # module inits zeros
    p['norm_w'] = jnp.ones((1, D), jnp.float32)
    p['norm_b'] = jnp.zeros((1, D), jnp.float32)
    out_w = trunc_normal(keys[2], (D, outputdim))
    p['out_w'] = jnp.pad(out_w, ((0, 0), (0, n_out_pad - outputdim))).astype(_MATMUL_DTYPE)
    p['out_b'] = jnp.zeros((1, n_out_pad), jnp.float32)
    blocks = []
    for i in range(depth):
        ks = jax.random.split(keys[4 + i], 6)
        blocks.append(dict(
            ln1_w=jnp.ones((1, D), jnp.float32), ln1_b=jnp.zeros((1, D), jnp.float32),
            wq=trunc_normal(ks[0], (D, D)).astype(_MATMUL_DTYPE), bq=jnp.zeros((1, D), jnp.float32),
            wk=trunc_normal(ks[1], (D, D)).astype(_MATMUL_DTYPE), bk=jnp.zeros((1, D), jnp.float32),
            wv=trunc_normal(ks[2], (D, D)).astype(_MATMUL_DTYPE), bv=jnp.zeros((1, D), jnp.float32),
            proj_w=trunc_normal(ks[3], (D, D)).astype(_MATMUL_DTYPE),
            proj_b=jnp.zeros((1, D), jnp.float32),
            ln2_w=jnp.ones((1, D), jnp.float32), ln2_b=jnp.zeros((1, D), jnp.float32),
            fc1_w=trunc_normal(ks[4], (D, Hd)).astype(_MATMUL_DTYPE),
            fc1_b=jnp.zeros((1, Hd), jnp.float32),
            fc2_w=trunc_normal(ks[5], (Hd, D)).astype(_MATMUL_DTYPE),
            fc2_b=jnp.zeros((1, D), jnp.float32),
        ))
    p['blocks'] = blocks
    return p


# ----------------------------------------------------------------------------- #
# Full forward (use_cls=False, drop rates = 0, init_values=None -> LayerScale off)
# ----------------------------------------------------------------------------- #
def decoder_forward(params, x, restore_idxs, num_heads):
    B, Lk, input_dim = x.shape
    D = params['input_proj_w'].shape[1]
    T = restore_idxs.shape[1]

    # input projection (Pallas tiled matmul, bf16 activation out)
    xp = linear_op(x.reshape(B * Lk, input_dim),
                   params['input_proj_w'], params['input_proj_b']).reshape(B, Lk, D)

    # mask tokens + MAE unshuffle gather (plain-JAX glue: data-dependent gather)
    # TODO(synk): the per-batch gather has no clean Pallas equivalent; done in XLA.
    n_mask = T + 1 - Lk
    mask_tok = jnp.broadcast_to(params['mask_token'], (B, n_mask, D))
    x_ = jnp.concatenate([xp.astype(jnp.float32), mask_tok], axis=1)     # (B, T+1, D)
    x_ = jnp.take_along_axis(x_, restore_idxs[:, :, None], axis=1)       # (B, T, D)

    # positional embedding (glue; pos_embed is zero-initialized in the module)
    x_ = (x_ + params['pos_embed'][:, :T, :]).astype(_ACT_DTYPE)

    # transformer blocks (Pallas)
    for blk in params['blocks']:
        x_ = block_forward(x_, blk, num_heads)

    # final norm + output layer (Pallas, fused, lane-padded weight -> slice back)
    out = linear_op(x_.reshape(B * T, D), params['out_w'], params['out_b'],
                    ln=(params['norm_w'], params['norm_b']), out_dtype=jnp.float32)
    out = out[:, :params['outputdim']]
    return out.reshape(B, T, params['outputdim'])


if __name__ == "__main__":
    key = jax.random.PRNGKey(0)
    # Small shapes consistent with the module's forward:
    #   x: (B, kept_tokens, input_dim), restore_idxs: (B, total_tokens)
    B, Lk, T = 2, 4, 8
    input_dim, outputdim, embed_dim = 16, 16, 32
    depth, num_heads, mlp_ratio = 2, 4, 4.0
    num_patches = T

    kp, kx, kr = jax.random.split(key, 3)
    params = init_params(kp, input_dim, outputdim, embed_dim, num_patches, depth, mlp_ratio)
    x = jax.random.normal(kx, (B, Lk, input_dim), dtype=jnp.float32)
    restore_idxs = jnp.stack(
        [jax.random.permutation(jax.random.fold_in(kr, b), T) for b in range(B)]
    ).astype(jnp.int32)                                                   # values in [0, T)

    out = decoder_forward(params, x, restore_idxs, num_heads)
    out = jax.block_until_ready(out)
    assert out.shape == (B, T, outputdim), out.shape
    assert jnp.all(jnp.isfinite(out))
    print("KERNEL_OK")
</pallas_src>

<mosaic_0001>
module attributes {stable_mosaic.version = 11 : i64} {
  func.func @kernel(%arg0: i32, %arg1: i32, %arg2: memref<8x16xf32, #tpu.memory_space<vmem>>, %arg3: memref<16x32xbf16, #tpu.memory_space<vmem>>, %arg4: memref<1x32xf32, #tpu.memory_space<vmem>>, %arg5: memref<8x32xbf16, #tpu.memory_space<vmem>>) attributes {dimension_semantics = [#tpu.dimension_semantics<parallel>, #tpu.dimension_semantics<arbitrary>], iteration_bounds = array<i64: 1, 1>, scalar_prefetch = 0 : i64, scratch_operands = 0 : i64, tpu.core_type = #tpu.core_type<tc>, window_params = [{transform_indices = @transform_0, window_bounds = array<i64: 8, 16>}, {transform_indices = @transform_1, window_bounds = array<i64: 16, 32>}, {transform_indices = @transform_2, window_bounds = array<i64: 1, 32>}, {transform_indices = @transform_3, window_bounds = array<i64: 8, 32>}]} {
    %c0 = arith.constant 0 : index
    %c0_0 = arith.constant 0 : index
    %0 = vector.load %arg2[%c0, %c0_0] : memref<8x16xf32, #tpu.memory_space<vmem>>, vector<8x16xf32>
    %1 = arith.truncf %0 : vector<8x16xf32> to vector<8x16xbf16>
    %c0_1 = arith.constant 0 : index
    %c0_2 = arith.constant 0 : index
    %2 = vector.load %arg3[%c0_1, %c0_2] : memref<16x32xbf16, #tpu.memory_space<vmem>>, vector<16x32xbf16>
    %cst = arith.constant dense<0.000000e+00> : vector<8x32xf32>
    %3 = tpu.matmul %1, %2, %cst {dimension_numbers = #tpu.dot_dimension_numbers<[1], [0], [0], [1], [0, 0, 1, 1], [], []>} : vector<8x16xbf16>, vector<16x32xbf16>, vector<8x32xf32> -> vector<8x32xf32>
    %c0_3 = arith.constant 0 : index
    %c0_4 = arith.constant 0 : index
    %4 = vector.load %arg4[%c0_3, %c0_4] : memref<1x32xf32, #tpu.memory_space<vmem>>, vector<1x32xf32>
    %5 = vector.broadcast %4 : vector<1x32xf32> to vector<8x32xf32>
    %6 = arith.addf %3, %5 : vector<8x32xf32>
    %7 = arith.truncf %6 : vector<8x32xf32> to vector<8x32xbf16>
    %c0_5 = arith.constant 0 : index
    %c0_6 = arith.constant 0 : index
    %8 = vector.load %arg5[%c0_5, %c0_6] : memref<8x32xbf16, #tpu.memory_space<vmem>>, vector<8x32xbf16>
    tpu.vector_store %arg5[%c0_5, %c0_6], %7 {strides = array<i32>} : memref<8x32xbf16, #tpu.memory_space<vmem>>, vector<8x32xbf16>,
    return
  }
  func.func @transform_0(%arg0: i32, %arg1: i32) -> (i32, i32) {
    %c0_i32 = arith.constant 0 : i32
    %c0_i32_0 = arith.constant 0 : i32
    return %arg0, %c0_i32 : i32, i32
  }
  func.func @transform_1(%arg0: i32, %arg1: i32) -> (i32, i32) {
    %c0_i32 = arith.constant 0 : i32
    %c0_i32_0 = arith.constant 0 : i32
    return %c0_i32, %arg1 : i32, i32
  }
  func.func @transform_2(%arg0: i32, %arg1: i32) -> (i32, i32) {
    %c0_i32 = arith.constant 0 : i32
    %c0_i32_0 = arith.constant 0 : i32
    return %c0_i32, %arg1 : i32, i32
  }
  func.func @transform_3(%arg0: i32, %arg1: i32) -> (i32, i32) {
    %c0_i32 = arith.constant 0 : i32
    return %arg0, %arg1 : i32, i32
  }
}

</mosaic_0001>

<llo_original>
// kernel: tpu_custom_call.1
$region0: #{tpu_custom_call.1}
  #allocation0 [shape = 'u32[]', space=smem, size = 0x4, offset = 0x4, fixed_abs, tag = 'smem constant byte address 0x4 - core index']
  #allocation1 [shape = 'u32[144,128]{1,0:T(1,128)}', space=vmem, size = 0x12000, scoped, tag = 'internal scratch']
  %s0 = inlined_call_operand.hbm [shape: f32[8,16], index: 0, kind: input, shape index: {}]
  %s1 = inlined_call_operand.hbm [shape: bf16[16,32], index: 1, kind: input, shape index: {}]
  %s2 = inlined_call_operand.vmem [shape: f32[1,32], index: 2, kind: input, shape index: {}]
  %s3 = inlined_call_operand.hbm [shape: bf16[8,32], index: 3, kind: output, shape index: {}]
  %s4 = sld [smem:[#allocation0]]
  $region30: #{tpu_custom_call.1} parent=0
    _
  %s6 = ssub.s32 1, %s4
  %s7 = scalar_select 0, %s6, %s4
  $region1: #{tpu_custom_call.1} parent=0
    #allocation2 [shape = 'u8[4096]{0}', space=vmem, size = 0x1000, scoped, tag = 'input window, operand 0, single buffered']
    #allocation3 [shape = 's32[1]{0}', space=sflag, size = 0x4, scoped, tag = 'scoped memory for tpu_custom_call.1']
    #allocation4 [shape = 's32[1]{0}', space=sflag, size = 0x4, scoped, tag = 'scoped memory for tpu_custom_call.1']
    #allocation5 [shape = 'u8[4096]{0}', space=vmem, size = 0x1000, scoped, tag = 'input window, operand 1, single buffered']
    #allocation6 [shape = 's32[1]{0}', space=sflag, size = 0x4, scoped, tag = 'scoped memory for tpu_custom_call.1']
    #allocation7 [shape = 'u8[2048]{0}', space=vmem, size = 0x800, scoped, tag = 'output window, operand 0, single buffered']
    %8 = vsyncpa [#allocation3], 0
    %9 = vsyncpa [#allocation6], 0
    %10 = vsyncpa [#allocation4], 0
    // Predicated region
    $region2: #{tpu_custom_call.1} parent=1 // pred_check
      _
    $region3: #{tpu_custom_call.1} parent=1 // pred_check_branch
      %12 = sbr.rel (0) target = $region5
    $region4: #{tpu_custom_call.1} parent=1 // pred_region
      %s14 = ssub.s32 128, 128
      %15 = vsyncadd [#allocation3], %s14
      %s17 = sshll.u32 [#allocation2], 4
      %s18 = int_to_ptr.vmem [resolvable:$true] %s17
      %20 = dma.hbm_to_vmem [thread:$0]  %s0, 128, %s18, [#allocation3]
    $region5: #{tpu_custom_call.1} parent=1 // pred_fallthru
      _
    // Predicated region
    $region6: #{tpu_custom_call.1} parent=1 // pred_check
      _
    $region7: #{tpu_custom_call.1} parent=1 // pred_check_branch
      %22 = sbr.rel (0) target = $region9
    $region8: #{tpu_custom_call.1} parent=1 // pred_region
      %s24 = ssub.s32 128, 128
      %25 = vsyncadd [#allocation6], %s24
      %s26 = sshll.u32 [#allocation5], 4
      %s27 = int_to_ptr.vmem [resolvable:$true] %s26
      %32 = dma.hbm_to_vmem [thread:$0]  %s1, 128, %s27, [#allocation6], 64, 64, 4
    $region9: #{tpu_custom_call.1} parent=1 // pred_fallthru
      _
    // Predicated region
    $region10: #{tpu_custom_call.1} parent=1 // pred_check
      _
    $region11: #{tpu_custom_call.1} parent=1 // pred_check_branch
      %34 = sbr.rel (0) target = $region13
    $region12: #{tpu_custom_call.1} parent=1 // pred_region
      _
    $region13: #{tpu_custom_call.1} parent=1 // pred_fallthru
      _
    // Predicated region
    $region14: #{tpu_custom_call.1} parent=1 // pred_check
      _
    $region15: #{tpu_custom_call.1} parent=1 // pred_check_branch
      %36 = sbr.rel (0) target = $region17
    $region16: #{tpu_custom_call.1} parent=1 // pred_region
      %37 = dma.done [#allocation3], 128
    $region17: #{tpu_custom_call.1} parent=1 // pred_fallthru
      _
    // Predicated region
    $region18: #{tpu_custom_call.1} parent=1 // pred_check
      _
    $region19: #{tpu_custom_call.1} parent=1 // pred_check_branch
      %39 = sbr.rel (0) target = $region21
    $region20: #{tpu_custom_call.1} parent=1 // pred_region
      %40 = dma.done [#allocation6], 128
    $region21: #{tpu_custom_call.1} parent=1 // pred_fallthru
      _
    %v42 = vld [vmem:[#allocation2] sm:$0xff]
    %v43 = vpack.c.bf16 %v42, %v42
    %v44 = vld [vmem:[#allocation5] sm:$0xf]
    %v45 = vld [vmem:[#allocation5 + $0x4] sm:$0xf]
    %v46 = vld [vmem:[%s2] sm:$0x1]
    %v48 = vlaneseq
    %v49 = vshrl.u32 %v48, 7
    %v50 = vsub.s32 0, %v49
    %v51 = vrot.slane %v46, %v50
    %v55 = vunpack.c.l.b16 %v44
    %v56 = vunpack.c.l.b16 %v45
    %v57 = vpack.c.b16 %v56, %v55
    %vm59 = vcmask 130048
    %v61 = vsel %vm59, %v43, 0
    %63 = vmatprep.subr.bf16.mxu0 0
    %64 = vmatpush1.bf16.msra.mxu0 0
    %65 = vmatprep.subr.bf16.mxu0 0
    %66 = vmatpush1.bf16.msra.mxu0 0
    %67 = vmatprep.subr.bf16.mxu0 0
    %68 = vmatpush1.bf16.msra.mxu0 0
    %69 = vmatprep.subr.bf16.mxu0 0
    %70 = vmatpush1.bf16.msra.mxu0 0
    %71 = vmatprep.subr.bf16.mxu0 0
    %72 = vmatpush1.bf16.msra.mxu0 0
    %73 = vmatprep.subr.bf16.mxu0 0
    %74 = vmatpush1.bf16.msra.mxu0 0
    %75 = vmatprep.subr.bf16.mxu0 0
    %76 = vmatpush1.bf16.msra.mxu0 0
    %77 = vmatprep.subr.bf16.mxu0 0
    %78 = vmatpush1.bf16.msra.mxu0 %v57
    %79 = vmatprep.subr.bf16.mxu0 0
    %80 = vmatpush2.bf16.msra.mxu0 0
    %81 = vmatprep.subr.bf16.mxu0 0
    %82 = vmatpush2.bf16.msra.mxu0 0
    %83 = vmatprep.subr.bf16.mxu0 0
    %84 = vmatpush2.bf16.msra.mxu0 0
    %85 = vmatprep.subr.bf16.mxu0 0
    %86 = vmatpush2.bf16.msra.mxu0 0
    %87 = vmatprep.subr.bf16.mxu0 0
    %88 = vmatpush2.bf16.msra.mxu0 0
    %89 = vmatprep.subr.bf16.mxu0 0
    %90 = vmatpush2.bf16.msra.mxu0 0
    %91 = vmatprep.subr.bf16.mxu0 0
    %92 = vmatpush2.bf16.msra.mxu0 0
    %93 = vmatprep.subr.bf16.mxu0 0
    %94 = vmatpush2.bf16.msra.mxu0 0
    %95 = vmatprep.mubr.bf16.mxu0 0
    %96 = vmatmul.mubr.bf16.gmra.mxu0 %v61
    %v97 = vpop.f32.mrf.mxu0
    %v98 = vadd.f32 %v51, %v97
    %v99 = vpop.f32.mrf.mxu0
    %v100 = vpop.f32.mrf.mxu0
    %v101 = vpop.f32.mrf.mxu0
    %102 = vdwg.mxu0
    %v103 = vpack.c.bf16 %v98, %v98
    %vm104 = vcmask 257024
    %105 = vst.msk [vmem:[#allocation7] sm:$0xf] %vm104, %v103
    // Predicated region
    $region22: #{tpu_custom_call.1} parent=1 // pred_check
      _
    $region23: #{tpu_custom_call.1} parent=1 // pred_check_branch
      %107 = sbr.rel (0) target = $region25
    $region24: #{tpu_custom_call.1} parent=1 // pred_region
      %s109 = ssub.s32 64, 64
      %110 = vsyncadd [#allocation4], %s109
      %s112 = sshll.u32 [#allocation7], 4
      %s113 = int_to_ptr.vmem [resolvable:$true] %s112
      %115 = dma.vmem_to_hbm [thread:$0]  %s113, 64, %s3, [#allocation4]
    $region25: #{tpu_custom_call.1} parent=1 // pred_fallthru
      _
    // Predicated region
    $region26: #{tpu_custom_call.1} parent=1 // pred_check
      _
    $region27: #{tpu_custom_call.1} parent=1 // pred_check_branch
      %117 = sbr.rel (0) target = $region29
    $region28: #{tpu_custom_call.1} parent=1 // pred_region
      %118 = dma.done [#allocation4], 64
    $region29: #{tpu_custom_call.1} parent=1 // pred_fallthru
      _
    %119 = vsyncpa [#allocation3], 1
    %120 = vsyncpa [#allocation6], 1
    %121 = vsyncpa [#allocation4], 1

</llo_original>
